<compile_context>
chip_gen: v7x
topology: tpu7x:2x2x1
jax: 0.10.0
libtpu: 0.0.40
codegen_flags: <defaults>
</compile_context>

<pallas_src>
import jax
import jax.numpy as jnp
from jax.experimental import pallas as pl
from jax.experimental.pallas import tpu as pltpu

_LANE = 128
_SUBLANE = 8


def _hsv2rgb_kernel(x_ref, o_ref):
    # Block: (1, 3, TILE_R, 128).  Compute in f32 regardless of I/O dtype.
    # No clip on h: for t = 6h outside [0,6] every ramp below saturates to the
    # same value the PyTorch clamp(h,0,1) path produces (exact equivalence).
    h = x_ref[0, 0, :, :].astype(jnp.float32)
    s = jnp.clip(x_ref[0, 1, :, :].astype(jnp.float32), 0.0, 1.0)
    v = jnp.clip(x_ref[0, 2, :, :].astype(jnp.float32), 0.0, 1.0)

    t = h * 6.0          # clamp(h*360 - 60k, 0, 60)/60 == clip(t - k, 0, 1)
    m = v * s            # v - v*(1-s)
    vs = v - m           # v*(1-s)

    r = v + m * (jnp.clip(t - 4.0, 0.0, 1.0) - jnp.clip(t - 1.0, 0.0, 1.0))
    g = vs + m * (jnp.clip(t, 0.0, 1.0) - jnp.clip(t - 3.0, 0.0, 1.0))
    b = vs + m * (jnp.clip(t - 2.0, 0.0, 1.0) - jnp.clip(t - 5.0, 0.0, 1.0))

    dt = o_ref.dtype
    o_ref[0, 0, :, :] = jnp.clip(r, 0.0, 1.0).astype(dt)
    o_ref[0, 1, :, :] = jnp.clip(g, 0.0, 1.0).astype(dt)
    o_ref[0, 2, :, :] = jnp.clip(b, 0.0, 1.0).astype(dt)


def _round_up(a, b):
    return (a + b - 1) // b * b


def hsv2rgb(img, *, max_tile_elems=512 * 1024, alias_input=False):
    """HSV -> RGB conversion matching the PyTorch HSV2RGB module.

    img: (N, 3, H, W) float array (f32 or bf16); HSV clamped to [0,1] inside.
    returns: (N, 3, H, W) array of the same dtype, RGB in [0, 1].
    alias_input: set True only if the caller can donate `img` (in-place output).
    """
    N, C, H, W = img.shape
    assert C == 3, "expected 3-channel HSV input"
    L = H * W
    itemsize = jnp.dtype(img.dtype).itemsize

    # Pad only to the (8,128) vreg granule; common shapes need no copy at all.
    min_tile = _SUBLANE * _LANE  # 1024
    l_pad = _round_up(L, min_tile)
    padded = l_pad != L

    x = img.reshape(N, 3, L)
    if padded:
        x = jnp.pad(x, ((0, 0), (0, 0), (0, l_pad - L)))
    rows = l_pad // _LANE                 # always a multiple of 8
    x = x.reshape(N, 3, rows, _LANE)

    # Row-tile size: biggest tile <= max_tile_elems, multiple of 8 sublanes.
    max_tile_rows = max(_SUBLANE, (max_tile_elems // _LANE) // _SUBLANE * _SUBLANE)
    tile_r = min(rows, max_tile_rows)
    num_tiles = pl.cdiv(rows, tile_r)

    # v7x megacore: guarantee >= 2 grid steps along a "parallel" axis when the
    # whole problem would otherwise fit in a single step (N == 1, small image).
    if N * num_tiles < 2 and rows >= 2 * _SUBLANE:
        tile_r = _round_up(pl.cdiv(rows, 2), _SUBLANE)
        num_tiles = pl.cdiv(rows, tile_r)

    # 2 double-buffered input + 2 output buffers of (3, tile_r, 128) + headroom.
    block_bytes = 3 * tile_r * _LANE * itemsize
    vmem_limit = max(int(4 * block_bytes * 1.25) + (2 << 20), 16 << 20)

    out = pl.pallas_call(
        _hsv2rgb_kernel,
        out_shape=jax.ShapeDtypeStruct((N, 3, rows, _LANE), img.dtype),
        grid_spec=pltpu.PrefetchScalarGridSpec(
            num_scalar_prefetch=0,
            grid=(N, num_tiles),
            in_specs=[pl.BlockSpec((1, 3, tile_r, _LANE),
                                   lambda n, t: (n, 0, t, 0))],
            out_specs=pl.BlockSpec((1, 3, tile_r, _LANE),
                                   lambda n, t: (n, 0, t, 0)),
        ),
        compiler_params=pltpu.CompilerParams(
            dimension_semantics=("parallel", "parallel"),
            vmem_limit_bytes=vmem_limit),
        cost_estimate=pl.CostEstimate(
            flops=39 * N * l_pad,                      # ~39 VALU ops / pixel
            transcendentals=0,
            bytes_accessed=2 * N * 3 * l_pad * itemsize),
        input_output_aliases=({0: 0} if alias_input else {}),
    )(x)

    out = out.reshape(N, 3, l_pad)
    if padded:
        out = out[:, :, :L]
    return out.reshape(N, 3, H, W)


def _hsv2rgb_ref(img):
    # Pure-JAX reference mirroring the PyTorch module exactly (validation only).
    img = jnp.clip(img, 0.0, 1.0)
    h, s, v = img[:, 0], img[:, 1], img[:, 2]
    m2 = (v * (1 - s) - v) / 60.0
    m4 = -m2
    r = (v
         + jnp.clip(h * 360 - 60, 0.0, 60.0) * m2
         + jnp.clip(h * 360 - 240, 0.0, 60.0) * m4)
    m1 = (v - v * (1 - s)) / 60.0
    m3 = -m1
    g = (v * (1 - s)
         + jnp.clip(h * 360 - 0, 0.0, 60.0) * m1
         + jnp.clip(h * 360 - 180, 0.0, 60.0) * m3)
    m2b = (v - v * (1 - s)) / 60.0
    m4b = -m2b
    b = (v * (1 - s)
         + jnp.clip(h * 360 - 120, 0.0, 60.0) * m2b
         + jnp.clip(h * 360 - 300, 0.0, 60.0) * m4b)
    out = jnp.stack((r, g, b), axis=1)
    return jnp.clip(out, 0.0, 1.0)


if __name__ == "__main__":
    key = jax.random.PRNGKey(0)

    # Small HSV batch: (N=2, C=3, H=16, W=16); range exercises the clamps.
    x = jax.random.uniform(key, (2, 3, 16, 16), dtype=jnp.float32,
                           minval=-0.1, maxval=1.1)
    out = jax.block_until_ready(hsv2rgb(x))
    ref = _hsv2rgb_ref(x)
    assert out.shape == (2, 3, 16, 16)
    assert jnp.allclose(out, ref, atol=1e-5, rtol=1e-5), "mismatch vs reference"

    # Odd spatial shape exercises the ragged-tail (pad + slice) path.
    x2 = jax.random.uniform(jax.random.PRNGKey(1), (2, 3, 17, 23),
                            dtype=jnp.float32, minval=-0.1, maxval=1.1)
    out2 = jax.block_until_ready(hsv2rgb(x2))
    ref2 = _hsv2rgb_ref(x2)
    assert out2.shape == (2, 3, 17, 23)
    assert jnp.allclose(out2, ref2, atol=1e-5, rtol=1e-5), "mismatch (ragged)"

    # N=1, L a multiple of 1024: zero-copy path + forced 2-way row split
    # (exercises the v7x both-TensorCores grid layout).
    x3 = jax.random.uniform(jax.random.PRNGKey(2), (1, 3, 64, 64),
                            dtype=jnp.float32, minval=-0.1, maxval=1.1)
    out3 = jax.block_until_ready(hsv2rgb(x3))
    ref3 = _hsv2rgb_ref(x3)
    assert out3.shape == (1, 3, 64, 64)
    assert jnp.allclose(out3, ref3, atol=1e-5, rtol=1e-5), "mismatch (split)"

    print("KERNEL_OK")
</pallas_src>

<mosaic_0001>
module attributes {stable_mosaic.version = 11 : i64} {
  func.func @_hsv2rgb_kernel(%arg0: i32, %arg1: i32, %arg2: memref<1x3x8x128xf32, #tpu.memory_space<vmem>>, %arg3: memref<1x3x8x128xf32, #tpu.memory_space<vmem>>) attributes {dimension_semantics = [#tpu.dimension_semantics<parallel>, #tpu.dimension_semantics<parallel>], iteration_bounds = array<i64: 2, 1>, scalar_prefetch = 0 : i64, scratch_operands = 0 : i64, tpu.core_type = #tpu.core_type<tc>, window_params = [{transform_indices = @transform_0, window_bounds = array<i64: 1, 3, 8, 128>}, {transform_indices = @transform_1, window_bounds = array<i64: 1, 3, 8, 128>}]} {
    %c0 = arith.constant 0 : index
    %c0_0 = arith.constant 0 : index
    %c0_1 = arith.constant 0 : index
    %c0_2 = arith.constant 0 : index
    %0 = vector.load %arg2[%c0, %c0_0, %c0_1, %c0_2] : memref<1x3x8x128xf32, #tpu.memory_space<vmem>>, vector<1x1x8x128xf32>
    %1 = vector.shape_cast %0 : vector<1x1x8x128xf32> to vector<8x128xf32>
    %c0_3 = arith.constant 0 : index
    %c1 = arith.constant 1 : index
    %c0_4 = arith.constant 0 : index
    %c0_5 = arith.constant 0 : index
    %2 = vector.load %arg2[%c0_3, %c1, %c0_4, %c0_5] : memref<1x3x8x128xf32, #tpu.memory_space<vmem>>, vector<1x1x8x128xf32>
    %3 = vector.shape_cast %2 : vector<1x1x8x128xf32> to vector<8x128xf32>
    %cst = arith.constant 0.000000e+00 : f32
    %cst_6 = arith.constant 1.000000e+00 : f32
    %4 = vector.broadcast %cst : f32 to vector<8x128xf32>
    %5 = arith.maximumf %4, %3 : vector<8x128xf32>
    %6 = vector.broadcast %cst_6 : f32 to vector<8x128xf32>
    %7 = arith.minimumf %6, %5 : vector<8x128xf32>
    %c0_7 = arith.constant 0 : index
    %c2 = arith.constant 2 : index
    %c0_8 = arith.constant 0 : index
    %c0_9 = arith.constant 0 : index
    %8 = vector.load %arg2[%c0_7, %c2, %c0_8, %c0_9] : memref<1x3x8x128xf32, #tpu.memory_space<vmem>>, vector<1x1x8x128xf32>
    %9 = vector.shape_cast %8 : vector<1x1x8x128xf32> to vector<8x128xf32>
    %cst_10 = arith.constant 0.000000e+00 : f32
    %cst_11 = arith.constant 1.000000e+00 : f32
    %10 = vector.broadcast %cst_10 : f32 to vector<8x128xf32>
    %11 = arith.maximumf %10, %9 : vector<8x128xf32>
    %12 = vector.broadcast %cst_11 : f32 to vector<8x128xf32>
    %13 = arith.minimumf %12, %11 : vector<8x128xf32>
    %cst_12 = arith.constant 6.000000e+00 : f32
    %14 = vector.broadcast %cst_12 : f32 to vector<8x128xf32>
    %15 = arith.mulf %1, %14 : vector<8x128xf32>
    %16 = arith.mulf %13, %7 : vector<8x128xf32>
    %17 = arith.subf %13, %16 : vector<8x128xf32>
    %cst_13 = arith.constant 4.000000e+00 : f32
    %18 = vector.broadcast %cst_13 : f32 to vector<8x128xf32>
    %19 = arith.subf %15, %18 : vector<8x128xf32>
    %cst_14 = arith.constant 0.000000e+00 : f32
    %cst_15 = arith.constant 1.000000e+00 : f32
    %20 = vector.broadcast %cst_14 : f32 to vector<8x128xf32>
    %21 = arith.maximumf %20, %19 : vector<8x128xf32>
    %22 = vector.broadcast %cst_15 : f32 to vector<8x128xf32>
    %23 = arith.minimumf %22, %21 : vector<8x128xf32>
    %cst_16 = arith.constant 1.000000e+00 : f32
    %24 = vector.broadcast %cst_16 : f32 to vector<8x128xf32>
    %25 = arith.subf %15, %24 : vector<8x128xf32>
    %cst_17 = arith.constant 0.000000e+00 : f32
    %cst_18 = arith.constant 1.000000e+00 : f32
    %26 = vector.broadcast %cst_17 : f32 to vector<8x128xf32>
    %27 = arith.maximumf %26, %25 : vector<8x128xf32>
    %28 = vector.broadcast %cst_18 : f32 to vector<8x128xf32>
    %29 = arith.minimumf %28, %27 : vector<8x128xf32>
    %30 = arith.subf %23, %29 : vector<8x128xf32>
    %31 = arith.mulf %16, %30 : vector<8x128xf32>
    %32 = arith.addf %13, %31 : vector<8x128xf32>
    %cst_19 = arith.constant 0.000000e+00 : f32
    %cst_20 = arith.constant 1.000000e+00 : f32
    %33 = vector.broadcast %cst_19 : f32 to vector<8x128xf32>
    %34 = arith.maximumf %33, %15 : vector<8x128xf32>
    %35 = vector.broadcast %cst_20 : f32 to vector<8x128xf32>
    %36 = arith.minimumf %35, %34 : vector<8x128xf32>
    %cst_21 = arith.constant 3.000000e+00 : f32
    %37 = vector.broadcast %cst_21 : f32 to vector<8x128xf32>
    %38 = arith.subf %15, %37 : vector<8x128xf32>
    %cst_22 = arith.constant 0.000000e+00 : f32
    %cst_23 = arith.constant 1.000000e+00 : f32
    %39 = vector.broadcast %cst_22 : f32 to vector<8x128xf32>
    %40 = arith.maximumf %39, %38 : vector<8x128xf32>
    %41 = vector.broadcast %cst_23 : f32 to vector<8x128xf32>
    %42 = arith.minimumf %41, %40 : vector<8x128xf32>
    %43 = arith.subf %36, %42 : vector<8x128xf32>
    %44 = arith.mulf %16, %43 : vector<8x128xf32>
    %45 = arith.addf %17, %44 : vector<8x128xf32>
    %cst_24 = arith.constant 2.000000e+00 : f32
    %46 = vector.broadcast %cst_24 : f32 to vector<8x128xf32>
    %47 = arith.subf %15, %46 : vector<8x128xf32>
    %cst_25 = arith.constant 0.000000e+00 : f32
    %cst_26 = arith.constant 1.000000e+00 : f32
    %48 = vector.broadcast %cst_25 : f32 to vector<8x128xf32>
    %49 = arith.maximumf %48, %47 : vector<8x128xf32>
    %50 = vector.broadcast %cst_26 : f32 to vector<8x128xf32>
    %51 = arith.minimumf %50, %49 : vector<8x128xf32>
    %cst_27 = arith.constant 5.000000e+00 : f32
    %52 = vector.broadcast %cst_27 : f32 to vector<8x128xf32>
    %53 = arith.subf %15, %52 : vector<8x128xf32>
    %cst_28 = arith.constant 0.000000e+00 : f32
    %cst_29 = arith.constant 1.000000e+00 : f32
    %54 = vector.broadcast %cst_28 : f32 to vector<8x128xf32>
    %55 = arith.maximumf %54, %53 : vector<8x128xf32>
    %56 = vector.broadcast %cst_29 : f32 to vector<8x128xf32>
    %57 = arith.minimumf %56, %55 : vector<8x128xf32>
    %58 = arith.subf %51, %57 : vector<8x128xf32>
    %59 = arith.mulf %16, %58 : vector<8x128xf32>
    %60 = arith.addf %17, %59 : vector<8x128xf32>
    %cst_30 = arith.constant 0.000000e+00 : f32
    %cst_31 = arith.constant 1.000000e+00 : f32
    %61 = vector.broadcast %cst_30 : f32 to vector<8x128xf32>
    %62 = arith.maximumf %61, %32 : vector<8x128xf32>
    %63 = vector.broadcast %cst_31 : f32 to vector<8x128xf32>
    %64 = arith.minimumf %63, %62 : vector<8x128xf32>
    %c0_32 = arith.constant 0 : index
    %c0_33 = arith.constant 0 : index
    %c0_34 = arith.constant 0 : index
    %c0_35 = arith.constant 0 : index
    %65 = vector.load %arg3[%c0_32, %c0_33, %c0_34, %c0_35] : memref<1x3x8x128xf32, #tpu.memory_space<vmem>>, vector<1x1x8x128xf32>
    %66 = vector.shape_cast %65 : vector<1x1x8x128xf32> to vector<8x128xf32>
    %67 = vector.shape_cast %64 : vector<8x128xf32> to vector<1x1x8x128xf32>
    tpu.vector_store %arg3[%c0_32, %c0_33, %c0_34, %c0_35], %67 {strides = array<i32>} : memref<1x3x8x128xf32, #tpu.memory_space<vmem>>, vector<1x1x8x128xf32>,
    %cst_36 = arith.constant 0.000000e+00 : f32
    %cst_37 = arith.constant 1.000000e+00 : f32
    %68 = vector.broadcast %cst_36 : f32 to vector<8x128xf32>
    %69 = arith.maximumf %68, %45 : vector<8x128xf32>
    %70 = vector.broadcast %cst_37 : f32 to vector<8x128xf32>
    %71 = arith.minimumf %70, %69 : vector<8x128xf32>
    %c0_38 = arith.constant 0 : index
    %c1_39 = arith.constant 1 : index
    %c0_40 = arith.constant 0 : index
    %c0_41 = arith.constant 0 : index
    %72 = vector.load %arg3[%c0_38, %c1_39, %c0_40, %c0_41] : memref<1x3x8x128xf32, #tpu.memory_space<vmem>>, vector<1x1x8x128xf32>
    %73 = vector.shape_cast %72 : vector<1x1x8x128xf32> to vector<8x128xf32>
    %74 = vector.shape_cast %71 : vector<8x128xf32> to vector<1x1x8x128xf32>
    tpu.vector_store %arg3[%c0_38, %c1_39, %c0_40, %c0_41], %74 {strides = array<i32>} : memref<1x3x8x128xf32, #tpu.memory_space<vmem>>, vector<1x1x8x128xf32>,
    %cst_42 = arith.constant 0.000000e+00 : f32
    %cst_43 = arith.constant 1.000000e+00 : f32
    %75 = vector.broadcast %cst_42 : f32 to vector<8x128xf32>
    %76 = arith.maximumf %75, %60 : vector<8x128xf32>
    %77 = vector.broadcast %cst_43 : f32 to vector<8x128xf32>
    %78 = arith.minimumf %77, %76 : vector<8x128xf32>
    %c0_44 = arith.constant 0 : index
    %c2_45 = arith.constant 2 : index
    %c0_46 = arith.constant 0 : index
    %c0_47 = arith.constant 0 : index
    %79 = vector.load %arg3[%c0_44, %c2_45, %c0_46, %c0_47] : memref<1x3x8x128xf32, #tpu.memory_space<vmem>>, vector<1x1x8x128xf32>
    %80 = vector.shape_cast %79 : vector<1x1x8x128xf32> to vector<8x128xf32>
    %81 = vector.shape_cast %78 : vector<8x128xf32> to vector<1x1x8x128xf32>
    tpu.vector_store %arg3[%c0_44, %c2_45, %c0_46, %c0_47], %81 {strides = array<i32>} : memref<1x3x8x128xf32, #tpu.memory_space<vmem>>, vector<1x1x8x128xf32>,
    return
  }
  func.func @transform_0(%arg0: i32, %arg1: i32) -> (i32, i32, i32, i32) {
    %c0_i32 = arith.constant 0 : i32
    %c0_i32_0 = arith.constant 0 : i32
    %c0_i32_1 = arith.constant 0 : i32
    return %arg0, %c0_i32, %arg1, %c0_i32_0 : i32, i32, i32, i32
  }
  func.func @transform_1(%arg0: i32, %arg1: i32) -> (i32, i32, i32, i32) {
    %c0_i32 = arith.constant 0 : i32
    %c0_i32_0 = arith.constant 0 : i32
    %c0_i32_1 = arith.constant 0 : i32
    return %arg0, %c0_i32, %arg1, %c0_i32_0 : i32, i32, i32, i32
  }
}

</mosaic_0001>

<llo_original>
// kernel: tpu_custom_call.1
$region0: #{tpu_custom_call.1}
  #allocation0 [shape = 'u32[]', space=smem, size = 0x4, offset = 0x4, fixed_abs, tag = 'smem constant byte address 0x4 - core index']
  #allocation1 [shape = 'u32[144,128]{1,0:T(1,128)}', space=vmem, size = 0x12000, scoped, tag = 'internal scratch']
  %s0 = inlined_call_operand.hbm [shape: f32[2,3,8,128], index: 0, kind: input, shape index: {}]
  %s1 = inlined_call_operand.hbm [shape: f32[2,3,8,128], index: 1, kind: output, shape index: {}]
  %s2 = sld [smem:[#allocation0]]
  $region41: #{tpu_custom_call.1} parent=0
    _
  %s4 = ssub.s32 1, %s2
  %s5 = scalar_select 0, %s4, %s2
  $region1: #{tpu_custom_call.1} parent=0
    #allocation2 [shape = 'u8[24576]{0}', space=vmem, size = 0x6000, scoped, tag = 'input window, operand 0']
    #allocation3 [shape = 's32[2]{0}', space=sflag, size = 0x8, scoped, tag = 'scoped memory for tpu_custom_call.1']
    #allocation4 [shape = 's32[2]{0}', space=sflag, size = 0x8, scoped, tag = 'scoped memory for tpu_custom_call.1']
    #allocation5 [shape = 'u8[24576]{0}', space=vmem, size = 0x6000, scoped, tag = 'output window, operand 0']
    %6 = vsyncpa [#allocation3], 0
    %s7 = scalar_lea.sflag [#allocation3], 1
    %8 = vsyncpa %s7, 0
    %9 = vsyncpa [#allocation4], 0
    %s10 = scalar_lea.sflag [#allocation4], 1
    %11 = vsyncpa %s10, 0
    loop: start=0, step=1, limit=4
    $region2: #{tpu_custom_call.1} parent=1 // loop_pre_header
      _
    $region3: #{tpu_custom_call.1} parent=1 // loop_header
      %s13 = sphi 0, %s17
      %p14 = scmp.ge.s32.totalorder %s13, 4
      %s20 = sphi 0, %s32
      %s21 = sphi 0, %s28
      %s22 = sphi 0, %s20
      %s23 = sphi 0, %s21
      %s24 = sphi 0, %s22
      %s25 = sphi 0, %s23
      %s37 = sphi 0, %s39
      %s40 = sphi 0, %s37
      %s41 = sphi 0, %s40
      %s57 = sphi 0, %s41
      %s65 = sphi 0, %s67
      %s68 = sphi 0, %s65
      %s69 = sphi 0, %s68
      %s85 = sphi 0, %s69
    $region4: #{tpu_custom_call.1} parent=1 // loop_header_branch
      %16 = sbr.rel (%p14) target = $region8
    $region5: #{tpu_custom_call.1} parent=1 // loop_body
      %s18 = ssub.s32 %s13, 1
      %s19 = ssub.s32 %s13, 2
      %s26 = sadd.s32 1, %s21
      %p27 = scmp.ge.s32.totalorder %s26, 1
      %s28 = scalar_select %p27, 0, %s26
      %s29 = sadd.s32 1, %s20
      %s30 = scalar_select %p27, %s29, %s20
      %p31 = scmp.ge.s32.totalorder %s30, 2
      %s32 = scalar_select %p31, 0, %s30
      %s33 = ssub.s32 %s20, %s32
      %s34 = ssub.s32 %s21, %s28
      %s35 = sor.u32 %s33, %s34
      %p36 = scmp.eq.s32.totalorder %s35, 0
      %s38 = sadd.s32 %s37, 1
      %s39 = scalar_select %p36, %s37, %s38
      %p42 = pneg %p36
      %p43 = scmp.eq.s32.totalorder %s13, 1
      %p44 = por %p42, %p43
      %p45 = scmp.ne.s32.totalorder %s37, %s40
      %p46 = scmp.eq.s32.totalorder %s13, 0
      %p47 = por %p45, %p46
      %p48 = scmp.ne.s32.totalorder %s37, %s40
      %p49 = scmp.eq.s32.totalorder %s18, 1
      %p50 = por %p48, %p49
      %p51 = scmp.ne.s32.totalorder %s40, %s41
      %p52 = scmp.eq.s32.totalorder %s18, 0
      %p53 = por %p51, %p52
      %p54 = scmp.ne.s32.totalorder %s40, %s41
      %p55 = scmp.eq.s32.totalorder %s19, 1
      %p56 = por %p54, %p55
      %p58 = scmp.ne.s32.totalorder %s41, %s57
      %p59 = scmp.eq.s32.totalorder %s19, 0
      %p60 = por %p58, %p59
      %s61 = ssub.s32 %s20, %s32
      %s62 = ssub.s32 %s21, %s28
      %s63 = sor.u32 %s61, %s62
      %p64 = scmp.eq.s32.totalorder %s63, 0
      %s66 = sadd.s32 %s65, 1
      %s67 = scalar_select %p64, %s65, %s66
      %p70 = pneg %p64
      %p71 = scmp.eq.s32.totalorder %s13, 1
      %p72 = por %p70, %p71
      %p73 = scmp.ne.s32.totalorder %s65, %s68
      %p74 = scmp.eq.s32.totalorder %s13, 0
      %p75 = por %p73, %p74
      %p76 = scmp.ne.s32.totalorder %s65, %s68
      %p77 = scmp.eq.s32.totalorder %s18, 1
      %p78 = por %p76, %p77
      %p79 = scmp.ne.s32.totalorder %s68, %s69
      %p80 = scmp.eq.s32.totalorder %s18, 0
      %p81 = por %p79, %p80
      %p82 = scmp.ne.s32.totalorder %s68, %s69
      %p83 = scmp.eq.s32.totalorder %s19, 1
      %p84 = por %p82, %p83
      %p86 = scmp.ne.s32.totalorder %s69, %s85
      %p87 = scmp.eq.s32.totalorder %s19, 0
      %p88 = por %p86, %p87
      %p89 = scmp.le.s32.totalorder 1, %s13
      %p90 = scmp.lt.s32.totalorder %s13, 3
      %p91 = pnand %p89, %p90
      %p92 = pneg %p91
      // Predicated region
      $region9: #{tpu_custom_call.1} parent=5 // pred_check
        _
      $region10: #{tpu_custom_call.1} parent=5 // pred_check_branch
        %94 = sbr.rel (%p91) target = $region12
      $region11: #{tpu_custom_call.1} parent=5 // pred_region
        %s95 = ssub.s32 %s13, 1
      $region12: #{tpu_custom_call.1} parent=5 // pred_fallthru
        _
      %p96 = scmp.lt.s32.totalorder %s13, 2
      // Predicated region
      $region13: #{tpu_custom_call.1} parent=5 // pred_check
        %p97 = pneg %p96
      $region14: #{tpu_custom_call.1} parent=5 // pred_check_branch
        %99 = sbr.rel (%p97) target = $region16
      $region15: #{tpu_custom_call.1} parent=5 // pred_region
        // Predicated region
        $region17: #{tpu_custom_call.1} parent=15 // pred_check
          %p100 = pneg %p47
        $region18: #{tpu_custom_call.1} parent=15 // pred_check_branch
          %102 = sbr.rel (%p100) target = $region20
        $region19: #{tpu_custom_call.1} parent=15 // pred_region
          %s103 = sand.u32 %s37, 1
          %s104 = scalar_lea.sflag [#allocation3], %s103
          %s105 = sand.u32 %s37, 1
          %s106 = smul.addr %s105, 24
          %s107 = scalar_lea.vmem [#allocation2], %s106
          %s109 = ssub.s32 384, 384
          %110 = vsyncadd %s104, %s109
          %s111 = smul.addr %s20, 3
          %s112 = sadd.s32 %s21, %s111
          %s113 = smul.addr %s112, 128
          %s114 = scalar_lea.hbm %s0, %s113
          %s115 = sshll.u32 %s107, 4
          %s116 = int_to_ptr.vmem [resolvable:$true] %s115
          %121 = dma.hbm_to_vmem [thread:$0]  %s114, 384, %s116, %s104, 128, 128, 8
        $region20: #{tpu_custom_call.1} parent=15 // pred_fallthru
          _
      $region16: #{tpu_custom_call.1} parent=5 // pred_fallthru
        _
      %p122 = scmp.le.s32.totalorder 1, %s13
      %p123 = scmp.lt.s32.totalorder %s13, 3
      %p124 = pnand %p122, %p123
      %p125 = pneg %p124
      // Predicated region
      $region21: #{tpu_custom_call.1} parent=5 // pred_check
        _
      $region22: #{tpu_custom_call.1} parent=5 // pred_check_branch
        %127 = sbr.rel (%p124) target = $region24
      $region23: #{tpu_custom_call.1} parent=5 // pred_region
        %s128 = ssub.s32 %s13, 1
        %s129 = sand.u32 %s40, 1
        %s130 = scalar_lea.sflag [#allocation3], %s129
        %s131 = sand.u32 %s40, 1
        %s132 = smul.addr %s131, 24
        %s133 = scalar_lea.vmem [#allocation2], %s132
        // Predicated region
        $region25: #{tpu_custom_call.1} parent=23 // pred_check
          %p134 = pneg %p53
        $region26: #{tpu_custom_call.1} parent=23 // pred_check_branch
          %136 = sbr.rel (%p134) target = $region28
        $region27: #{tpu_custom_call.1} parent=23 // pred_region
          %137 = dma.done %s130, 384
        $region28: #{tpu_custom_call.1} parent=23 // pred_fallthru
          _
        %s138 = sand.u32 %s40, 1
        %s139 = scalar_lea.sflag [#allocation3], %s138
        %s140 = sand.u32 %s40, 1
        %s141 = smul.addr %s140, 24
        %s142 = scalar_lea.vmem [#allocation2], %s141
        %p143 = pneg %p53
        %p144 = pneg %p50
        %p145 = pneg %p81
        %p146 = pneg %p78
        %s147 = sand.u32 %s68, 1
        %s148 = scalar_lea.sflag [#allocation4], %s147
        %s149 = sand.u32 %s68, 1
        %s150 = smul.addr %s149, 24
        %s151 = scalar_lea.vmem [#allocation5], %s150
        %v152 = vld [vmem:[%s133] sm:$0xff]
        %s153 = scalar_lea.vmem %s133, 8 [#allocation2]
        %v154 = vld [vmem:[%s153] sm:$0xff]
        %v155 = vmax.f32 %v154, 0.0
        %v156 = vmin.f32 %v155, 1.0
        %s157 = scalar_lea.vmem %s133, 16 [#allocation2]
        %v158 = vld [vmem:[%s157] sm:$0xff]
        %v159 = vmax.f32 %v158, 0.0
        %v160 = vmin.f32 %v159, 1.0
        %v161 = vmul.f32 %v152, 6.0
        %v162 = vmul.f32 %v160, %v156
        %v163 = vsub.f32 %v160, %v162
        %v164 = vsub.f32 %v161, 4.0
        %v165 = vmax.f32 %v164, 0.0
        %v166 = vmin.f32 %v165, 1.0
        %v167 = vsub.f32 %v161, 1.0
        %v168 = vmax.f32 %v167, 0.0
        %v169 = vmin.f32 %v168, 1.0
        %v170 = vsub.f32 %v166, %v169
        %v171 = vmul.f32 %v162, %v170
        %v172 = vadd.f32 %v160, %v171
        %v173 = vmax.f32 %v161, 0.0
        %v174 = vmin.f32 %v173, 1.0
        %v175 = vsub.f32 %v161, 3.0
        %v176 = vmax.f32 %v175, 0.0
        %v177 = vmin.f32 %v176, 1.0
        %v178 = vsub.f32 %v174, %v177
        %v179 = vmul.f32 %v162, %v178
        %v180 = vadd.f32 %v163, %v179
        %v181 = vsub.f32 %v161, 2.0
        %v182 = vmax.f32 %v181, 0.0
        %v183 = vmin.f32 %v182, 1.0
        %v184 = vsub.f32 %v161, 5.0
        %v185 = vmax.f32 %v184, 0.0
        %v186 = vmin.f32 %v185, 1.0
        %v187 = vsub.f32 %v183, %v186
        %v188 = vmul.f32 %v162, %v187
        %v189 = vadd.f32 %v163, %v188
        %v190 = vmax.f32 %v172, 0.0
        %v191 = vmin.f32 %v190, 1.0
        %192 = vst [vmem:[%s151] sm:$0xff] %v191
        %v193 = vmax.f32 %v180, 0.0
        %v194 = vmin.f32 %v193, 1.0
        %s195 = scalar_lea.vmem %s151, 8 [#allocation5]
        %196 = vst [vmem:[%s195] sm:$0xff] %v194
        %v197 = vmax.f32 %v189, 0.0
        %v198 = vmin.f32 %v197, 1.0
        %s199 = scalar_lea.vmem %s151, 16 [#allocation5]
        %200 = vst [vmem:[%s199] sm:$0xff] %v198
        %s201 = sand.u32 %s68, 1
        %s202 = scalar_lea.sflag [#allocation4], %s201
        %s203 = sand.u32 %s68, 1
        %s204 = smul.addr %s203, 24
        %s205 = scalar_lea.vmem [#allocation5], %s204
        // Predicated region
        $region29: #{tpu_custom_call.1} parent=23 // pred_check
          %p206 = pneg %p78
        $region30: #{tpu_custom_call.1} parent=23 // pred_check_branch
          %208 = sbr.rel (%p206) target = $region32
        $region31: #{tpu_custom_call.1} parent=23 // pred_region
          %s210 = ssub.s32 384, 384
          %211 = vsyncadd %s202, %s210
          %s212 = smul.addr %s22, 3
          %s213 = sadd.s32 %s23, %s212
          %s214 = smul.addr %s213, 128
          %s215 = scalar_lea.hbm %s1, %s214
          %s216 = sshll.u32 %s205, 4
          %s217 = int_to_ptr.vmem [resolvable:$true] %s216
          %222 = dma.vmem_to_hbm [thread:$0]  %s217, 384, %s215, %s202, 128, 128, 8
        $region32: #{tpu_custom_call.1} parent=23 // pred_fallthru
          _
      $region24: #{tpu_custom_call.1} parent=5 // pred_fallthru
        _
      %p223 = scmp.le.s32.totalorder 2, %s13
      // Predicated region
      $region33: #{tpu_custom_call.1} parent=5 // pred_check
        %p224 = pneg %p223
      $region34: #{tpu_custom_call.1} parent=5 // pred_check_branch
        %226 = sbr.rel (%p224) target = $region36
      $region35: #{tpu_custom_call.1} parent=5 // pred_region
        %s227 = ssub.s32 %s13, 2
        // Predicated region
        $region37: #{tpu_custom_call.1} parent=35 // pred_check
          %p228 = pneg %p84
        $region38: #{tpu_custom_call.1} parent=35 // pred_check_branch
          %230 = sbr.rel (%p228) target = $region40
        $region39: #{tpu_custom_call.1} parent=35 // pred_region
          %s231 = sand.u32 %s69, 1
          %s232 = scalar_lea.sflag [#allocation4], %s231
          %s233 = sand.u32 %s69, 1
          %s234 = smul.addr %s233, 24
          %s235 = scalar_lea.vmem [#allocation5], %s234
          %236 = dma.done %s232, 384
        $region40: #{tpu_custom_call.1} parent=35 // pred_fallthru
          _
      $region36: #{tpu_custom_call.1} parent=5 // pred_fallthru
        _
    $region6: #{tpu_custom_call.1} parent=1 // loop_footer
      %s17 = sadd.s32 1, %s13
    $region7: #{tpu_custom_call.1} parent=1 // loop_footer_branch
      %12 = sbr.rel target = $region3
    $region8: #{tpu_custom_call.1} parent=1 // loop_exit
      _
    %237 = vsyncpa [#allocation3], 1
    %s238 = scalar_lea.sflag [#allocation3], 1
    %239 = vsyncpa %s238, 1
    %240 = vsyncpa [#allocation4], 1
    %s241 = scalar_lea.sflag [#allocation4], 1
    %242 = vsyncpa %s241, 1

</llo_original>
